<compile_context>
chip_gen: v6e
topology: v6e:2x2x1
jax: 0.10.0
libtpu: 0.0.40
codegen_flags: <defaults>
</compile_context>

<pallas_src>
import functools

import jax
import jax.numpy as jnp
from jax import lax
from jax.experimental import pallas as pl
from jax.experimental.pallas import tpu as pltpu

_LANES = 128
_SUBLANES = 8


def _round_up(x, m):
    return (x + m - 1) // m * m


def _pow_static(x, p):
    """x ** p via repeated VPU multiplies for positive integer p (avoids the
    EUP exp/log pow path and is NaN-safe for zero-masked inputs)."""
    if float(p).is_integer() and p >= 1:
        y = x
        for _ in range(int(p) - 1):
            y = y * x
        return y
    return x ** p  # non-integer exponent: transcendental fallback


def _dice_kernel(p_ref, t_ref, loss_ref, num_acc, den_acc, *,
                 smooth, p, rows_total, tile_r, needs_row_mask):
    """Grid = (batch_tiles, row_tiles).  Accumulates per-(batch,lane) partial
    sums of pred*targ and pred^p + targ^p into (TB, 128) scratch; the final
    cross-lane reduce + dice formula run once on the last row tile."""
    r = pl.program_id(1)
    nr = pl.num_programs(1)

    @pl.when(r == 0)
    def _():
        num_acc[...] = jnp.zeros_like(num_acc)
        den_acc[...] = jnp.zeros_like(den_acc)

    def load():
        # Keep HBM traffic at the input dtype; cast to f32 for accumulation.
        return (p_ref[...].astype(jnp.float32),
                t_ref[...].astype(jnp.float32))

    def accumulate(pred, targ):
        # pred/targ: (TB, tile_r, 128) f32.  Fold the row axis of the tile
        # (mostly vreg adds) into per-(batch, lane) partials.
        num_acc[...] += jnp.sum(pred * targ, axis=1)
        den_acc[...] += jnp.sum(_pow_static(pred, p) + _pow_static(targ, p),
                                axis=1)

    if needs_row_mask:
        last = nr - 1

        @pl.when(r != last)
        def _():  # steady state: no masking work at all
            accumulate(*load())

        @pl.when(r == last)
        def _():  # only the ragged last tile pays for iota/compare/select
            pred, targ = load()
            row = lax.broadcasted_iota(jnp.int32, pred.shape, 1)
            valid = row < (rows_total - r * tile_r)
            accumulate(jnp.where(valid, pred, 0.0),
                       jnp.where(valid, targ, 0.0))
    else:
        accumulate(*load())

    @pl.when(r == nr - 1)
    def _():
        # Single cross-lane reduce per batch row, epilogue only.
        num_tot = jnp.sum(num_acc[...], axis=-1, keepdims=True)   # (TB, 1)
        den_tot = jnp.sum(den_acc[...], axis=-1, keepdims=True)   # (TB, 1)
        loss = 1.0 - (num_tot + smooth) / (den_tot + smooth)      # (TB, 1)
        loss_ref[...] = jnp.broadcast_to(
            loss[:, :, None], loss_ref.shape).astype(loss_ref.dtype)


def binary_dice_loss(predict, target, smooth=1.0, p=2, reduction="mean",
                     target_block_bytes=1 << 20):
    assert predict.shape[0] == target.shape[0], \
        "predict & target batch size don't match"
    assert p > 0, "BinaryDiceLoss Pallas kernel requires p > 0"

    n = predict.shape[0]
    pred2d = predict.reshape(n, -1)
    targ2d = target.reshape(n, -1)
    d = pred2d.shape[1]

    if d % _LANES != 0:
        # Rare ragged-D case: pad feature dim to the next lane multiple.
        # Zeros contribute nothing to either sum for p > 0.
        pad = _LANES - d % _LANES
        pred2d = jnp.pad(pred2d, ((0, 0), (0, pad)))
        targ2d = jnp.pad(targ2d, ((0, 0), (0, pad)))
    rows = pred2d.shape[1] // _LANES
    pred3d = pred2d.reshape(n, rows, _LANES)          # free when D % 128 == 0
    targ3d = targ2d.reshape(n, rows, _LANES)

    itemsize = max(jnp.dtype(predict.dtype).itemsize,
                   jnp.dtype(target.dtype).itemsize)
    # Row budget so each input block is ~target_block_bytes (~1 MiB default),
    # counted in padded sublane tiles.
    budget_rows = max(_SUBLANES,
                      (target_block_bytes // (_LANES * itemsize))
                      // _SUBLANES * _SUBLANES)

    rows_eff = _round_up(rows, _SUBLANES)
    if rows_eff <= budget_rows:
        # Whole feature map per batch element fits in one block: finish the
        # reduction in a single step and pack several batch elements per block.
        tile_r = rows                       # == full dim (any value allowed)
        tb = min(n, max(1, budget_rows // rows_eff))
    else:
        # Large feature maps: one batch element per block, tile the rows.
        tile_r = budget_rows                # multiple of 8
        tb = 1

    grid = (pl.cdiv(n, tb), pl.cdiv(rows, tile_r))
    needs_row_mask = (rows % tile_r) != 0

    kernel = functools.partial(
        _dice_kernel,
        smooth=float(smooth), p=p, rows_total=rows, tile_r=tile_r,
        needs_row_mask=needs_row_mask)

    int_p = float(p).is_integer() and p >= 1
    cost = pl.CostEstimate(
        flops=int((2 * (int(p) if int_p else 2) + 2) * n * d),
        transcendentals=0 if int_p else int(2 * n * d),
        bytes_accessed=int(n * d * (jnp.dtype(predict.dtype).itemsize
                                    + jnp.dtype(target.dtype).itemsize)
                           + n * 4))

    per_batch = pl.pallas_call(
        kernel,
        out_shape=jax.ShapeDtypeStruct((n, 1, _LANES), jnp.float32),
        grid_spec=pltpu.PrefetchScalarGridSpec(
            num_scalar_prefetch=0,
            grid=grid,
            in_specs=[
                pl.BlockSpec((tb, tile_r, _LANES), lambda b, r: (b, r, 0)),
                pl.BlockSpec((tb, tile_r, _LANES), lambda b, r: (b, r, 0)),
            ],
            out_specs=pl.BlockSpec((tb, 1, _LANES), lambda b, r: (b, 0, 0)),
            scratch_shapes=[
                pltpu.VMEM((tb, _LANES), jnp.float32),
                pltpu.VMEM((tb, _LANES), jnp.float32),
            ],
        ),
        compiler_params=pltpu.CompilerParams(
            dimension_semantics=("parallel", "arbitrary"),
            vmem_limit_bytes=32 * 1024 * 1024),
        cost_estimate=cost,
    )(pred3d, targ3d)

    loss = per_batch[:, 0, 0]   # (N,)
    if reduction == "mean":
        return jnp.mean(loss)
    elif reduction == "sum":
        return jnp.sum(loss)
    elif reduction == "none":
        return loss
    else:
        raise Exception("Unexpected reduction {}".format(reduction))


def _reference(predict, target, smooth=1.0, p=2, reduction="mean"):
    pred = predict.reshape(predict.shape[0], -1).astype(jnp.float32)
    targ = target.reshape(target.shape[0], -1).astype(jnp.float32)
    num = jnp.sum(pred * targ, axis=1) + smooth
    den = jnp.sum(pred ** p + targ ** p, axis=1) + smooth
    loss = 1.0 - num / den
    if reduction == "mean":
        return jnp.mean(loss)
    if reduction == "sum":
        return jnp.sum(loss)
    return loss


if __name__ == "__main__":
    key = jax.random.PRNGKey(0)

    def make(shape, k):
        k1, k2 = jax.random.split(k)
        pred = jax.nn.sigmoid(jax.random.normal(k1, shape, dtype=jnp.float32))
        targ = (jax.random.uniform(k2, shape) > 0.5).astype(jnp.float32)
        return pred, targ

    keys = jax.random.split(key, 4)

    # 1) Main case: [N, C, H, W] = [2, 4, 16, 16] (D = 1024, lane-aligned),
    #    single reduction step, both batch elements packed in one block.
    pred, targ = make((2, 4, 16, 16), keys[0])
    out = jax.block_until_ready(binary_dice_loss(pred, targ))
    ref = _reference(pred, targ)
    assert jnp.allclose(out, ref, rtol=1e-5, atol=1e-5), (out, ref)

    # 2) Row count not a multiple of 8 (rows = 100) + 'none' reduction.
    pred, targ = make((3, 5, 40, 64), keys[1])
    out = jax.block_until_ready(binary_dice_loss(pred, targ, reduction="none"))
    ref = _reference(pred, targ, reduction="none")
    assert jnp.allclose(out, ref, rtol=1e-5, atol=1e-5), (out, ref)

    # 3) Multi-step reduction with a ragged last row tile (forced small blocks)
    #    + 'sum' reduction.
    pred, targ = make((2, 9, 32, 32), keys[2])   # D = 9216 -> rows = 72
    out = jax.block_until_ready(
        binary_dice_loss(pred, targ, reduction="sum",
                         target_block_bytes=16 * 1024))
    ref = _reference(pred, targ, reduction="sum")
    assert jnp.allclose(out, ref, rtol=1e-5, atol=1e-5), (out, ref)

    # 4) Ragged batch tile (N % TB != 0) and ragged feature dim (D % 128 != 0).
    pred, targ = make((6, 3, 10, 10), keys[3])   # D = 300
    out = jax.block_until_ready(
        binary_dice_loss(pred, targ, target_block_bytes=16 * 1024))
    ref = _reference(pred, targ)
    assert jnp.allclose(out, ref, rtol=1e-5, atol=1e-5), (out, ref)

    print("KERNEL_OK")
</pallas_src>

<mosaic_0001>
module attributes {stable_mosaic.version = 11 : i64} {
  func.func @_dice_kernel(%arg0: i32, %arg1: i32, %arg2: memref<2x8x128xf32, #tpu.memory_space<vmem>>, %arg3: memref<2x8x128xf32, #tpu.memory_space<vmem>>, %arg4: memref<2x1x128xf32, #tpu.memory_space<vmem>>, %arg5: memref<2x128xf32, #tpu.memory_space<vmem>>, %arg6: memref<2x128xf32, #tpu.memory_space<vmem>>) attributes {dimension_semantics = [#tpu.dimension_semantics<parallel>, #tpu.dimension_semantics<arbitrary>], iteration_bounds = array<i64: 1, 1>, scalar_prefetch = 0 : i64, scratch_operands = 2 : i64, tpu.core_type = #tpu.core_type<tc>, window_params = [{transform_indices = @transform_0, window_bounds = array<i64: 2, 8, 128>}, {transform_indices = @transform_1, window_bounds = array<i64: 2, 8, 128>}, {transform_indices = @transform_2, window_bounds = array<i64: 2, 1, 128>}]} {
    %c0_i32 = arith.constant 0 : i32
    %0 = arith.cmpi eq, %arg1, %c0_i32 : i32
    %1 = arith.extui %0 : i1 to i32
    %c0_i32_0 = arith.constant 0 : i32
    %2 = arith.cmpi ne, %1, %c0_i32_0 : i32
    scf.if %2 {
      %cst_17 = arith.constant 0.000000e+00 : f32
      %20 = vector.broadcast %cst_17 : f32 to vector<2x128xf32>
      %c0_18 = arith.constant 0 : index
      %c0_19 = arith.constant 0 : index
      %21 = vector.load %arg5[%c0_18, %c0_19] : memref<2x128xf32, #tpu.memory_space<vmem>>, vector<2x128xf32>
      tpu.vector_store %arg5[%c0_18, %c0_19], %20 {strides = array<i32>} : memref<2x128xf32, #tpu.memory_space<vmem>>, vector<2x128xf32>,
      %cst_20 = arith.constant 0.000000e+00 : f32
      %22 = vector.broadcast %cst_20 : f32 to vector<2x128xf32>
      %c0_21 = arith.constant 0 : index
      %c0_22 = arith.constant 0 : index
      %23 = vector.load %arg6[%c0_21, %c0_22] : memref<2x128xf32, #tpu.memory_space<vmem>>, vector<2x128xf32>
      tpu.vector_store %arg6[%c0_21, %c0_22], %22 {strides = array<i32>} : memref<2x128xf32, #tpu.memory_space<vmem>>, vector<2x128xf32>,
    } else {
    }
    %c0 = arith.constant 0 : index
    %c0_1 = arith.constant 0 : index
    %c0_2 = arith.constant 0 : index
    %3 = vector.load %arg2[%c0, %c0_1, %c0_2] : memref<2x8x128xf32, #tpu.memory_space<vmem>>, vector<2x8x128xf32>
    %c0_3 = arith.constant 0 : index
    %c0_4 = arith.constant 0 : index
    %c0_5 = arith.constant 0 : index
    %4 = vector.load %arg3[%c0_3, %c0_4, %c0_5] : memref<2x8x128xf32, #tpu.memory_space<vmem>>, vector<2x8x128xf32>
    %c0_6 = arith.constant 0 : index
    %c0_7 = arith.constant 0 : index
    %5 = vector.load %arg5[%c0_6, %c0_7] : memref<2x128xf32, #tpu.memory_space<vmem>>, vector<2x128xf32>
    %6 = arith.mulf %3, %4 : vector<2x8x128xf32>
    %cst = arith.constant dense<0.000000e+00> : vector<2x128xf32>
    %7 = vector.multi_reduction <add>, %6, %cst [1] : vector<2x8x128xf32> to vector<2x128xf32>
    %8 = arith.addf %5, %7 : vector<2x128xf32>
    %c0_8 = arith.constant 0 : index
    %c0_9 = arith.constant 0 : index
    %9 = vector.load %arg5[%c0_8, %c0_9] : memref<2x128xf32, #tpu.memory_space<vmem>>, vector<2x128xf32>
    tpu.vector_store %arg5[%c0_8, %c0_9], %8 {strides = array<i32>} : memref<2x128xf32, #tpu.memory_space<vmem>>, vector<2x128xf32>,
    %c0_10 = arith.constant 0 : index
    %c0_11 = arith.constant 0 : index
    %10 = vector.load %arg6[%c0_10, %c0_11] : memref<2x128xf32, #tpu.memory_space<vmem>>, vector<2x128xf32>
    %11 = arith.mulf %3, %3 : vector<2x8x128xf32>
    %12 = arith.mulf %4, %4 : vector<2x8x128xf32>
    %13 = arith.addf %11, %12 : vector<2x8x128xf32>
    %cst_12 = arith.constant dense<0.000000e+00> : vector<2x128xf32>
    %14 = vector.multi_reduction <add>, %13, %cst_12 [1] : vector<2x8x128xf32> to vector<2x128xf32>
    %15 = arith.addf %10, %14 : vector<2x128xf32>
    %c0_13 = arith.constant 0 : index
    %c0_14 = arith.constant 0 : index
    %16 = vector.load %arg6[%c0_13, %c0_14] : memref<2x128xf32, #tpu.memory_space<vmem>>, vector<2x128xf32>
    tpu.vector_store %arg6[%c0_13, %c0_14], %15 {strides = array<i32>} : memref<2x128xf32, #tpu.memory_space<vmem>>, vector<2x128xf32>,
    %c0_i32_15 = arith.constant 0 : i32
    %17 = arith.cmpi eq, %arg1, %c0_i32_15 : i32
    %18 = arith.extui %17 : i1 to i32
    %c0_i32_16 = arith.constant 0 : i32
    %19 = arith.cmpi ne, %18, %c0_i32_16 : i32
    scf.if %19 {
      %c0_17 = arith.constant 0 : index
      %c0_18 = arith.constant 0 : index
      %20 = vector.load %arg5[%c0_17, %c0_18] : memref<2x128xf32, #tpu.memory_space<vmem>>, vector<2x128xf32>
      %cst_19 = arith.constant dense<0.000000e+00> : vector<2xf32>
      %21 = vector.multi_reduction <add>, %20, %cst_19 [1] : vector<2x128xf32> to vector<2xf32>
      %22 = vector.shape_cast %21 : vector<2xf32> to vector<2x1xf32>
      %c0_20 = arith.constant 0 : index
      %c0_21 = arith.constant 0 : index
      %23 = vector.load %arg6[%c0_20, %c0_21] : memref<2x128xf32, #tpu.memory_space<vmem>>, vector<2x128xf32>
      %cst_22 = arith.constant dense<0.000000e+00> : vector<2xf32>
      %24 = vector.multi_reduction <add>, %23, %cst_22 [1] : vector<2x128xf32> to vector<2xf32>
      %25 = vector.shape_cast %24 : vector<2xf32> to vector<2x1xf32>
      %cst_23 = arith.constant 1.000000e+00 : f32
      %26 = vector.broadcast %cst_23 : f32 to vector<2x1xf32>
      %27 = arith.addf %22, %26 : vector<2x1xf32>
      %cst_24 = arith.constant 1.000000e+00 : f32
      %28 = vector.broadcast %cst_24 : f32 to vector<2x1xf32>
      %29 = arith.addf %25, %28 : vector<2x1xf32>
      %30 = arith.divf %27, %29 : vector<2x1xf32>
      %cst_25 = arith.constant 1.000000e+00 : f32
      %31 = vector.broadcast %cst_25 : f32 to vector<2x1xf32>
      %32 = arith.subf %31, %30 : vector<2x1xf32>
      %33 = vector.shape_cast %32 : vector<2x1xf32> to vector<2x1x1xf32>
      %34 = vector.shape_cast %33 : vector<2x1x1xf32> to vector<2x1x1xf32>
      %35 = vector.broadcast %34 : vector<2x1x1xf32> to vector<2x1x128xf32>
      %c0_26 = arith.constant 0 : index
      %c0_27 = arith.constant 0 : index
      %c0_28 = arith.constant 0 : index
      %36 = vector.load %arg4[%c0_26, %c0_27, %c0_28] : memref<2x1x128xf32, #tpu.memory_space<vmem>>, vector<2x1x128xf32>
      tpu.vector_store %arg4[%c0_26, %c0_27, %c0_28], %35 {strides = array<i32>} : memref<2x1x128xf32, #tpu.memory_space<vmem>>, vector<2x1x128xf32>,
    } else {
    }
    return
  }
  func.func @transform_0(%arg0: i32, %arg1: i32) -> (i32, i32, i32) {
    %c0_i32 = arith.constant 0 : i32
    %c0_i32_0 = arith.constant 0 : i32
    return %arg0, %arg1, %c0_i32 : i32, i32, i32
  }
  func.func @transform_1(%arg0: i32, %arg1: i32) -> (i32, i32, i32) {
    %c0_i32 = arith.constant 0 : i32
    %c0_i32_0 = arith.constant 0 : i32
    return %arg0, %arg1, %c0_i32 : i32, i32, i32
  }
  func.func @transform_2(%arg0: i32, %arg1: i32) -> (i32, i32, i32) {
    %c0_i32 = arith.constant 0 : i32
    %c0_i32_0 = arith.constant 0 : i32
    %c0_i32_1 = arith.constant 0 : i32
    return %arg0, %c0_i32, %c0_i32_0 : i32, i32, i32
  }
}

</mosaic_0001>

<llo_original>
// kernel: tpu_custom_call.1
$region0: #{tpu_custom_call.1}
  #allocation0 [shape = 'u32[]', space=smem, size = 0x4, offset = 0x4, fixed_abs, tag = 'smem constant byte address 0x4 - core index']
  #allocation1 [shape = 'u32[144,128]{1,0:T(1,128)}', space=vmem, size = 0x12000, scoped, tag = 'internal scratch']
  #allocation2 [shape = 'f32[2,128]{1,0:T(2,128)}', space=vmem, size = 0x400, scoped, tag = 'scratch operand']
  #allocation3 [shape = 'f32[2,128]{1,0:T(2,128)}', space=vmem, size = 0x400, scoped, tag = 'scratch operand']
  %s0 = inlined_call_operand.hbm [shape: f32[2,8,128], index: 0, kind: input, shape index: {}]
  %s1 = inlined_call_operand.hbm [shape: f32[2,8,128], index: 1, kind: input, shape index: {}]
  %s2 = inlined_call_operand.hbm [shape: f32[2,1,128], index: 2, kind: output, shape index: {}]
  %s3 = sld [smem:[#allocation0]]
  $region34: #{tpu_custom_call.1} parent=0
    _
  %s5 = ssub.s32 1, %s3
  %s6 = scalar_select 0, %s5, %s3
  $region1: #{tpu_custom_call.1} parent=0
    #allocation4 [shape = 'u8[8192]{0}', space=vmem, size = 0x2000, scoped, tag = 'input window, operand 0, single buffered']
    #allocation5 [shape = 's32[1]{0}', space=sflag, size = 0x4, scoped, tag = 'scoped memory for tpu_custom_call.1']
    #allocation6 [shape = 's32[1]{0}', space=sflag, size = 0x4, scoped, tag = 'scoped memory for tpu_custom_call.1']
    #allocation7 [shape = 'u8[8192]{0}', space=vmem, size = 0x2000, scoped, tag = 'input window, operand 1, single buffered']
    #allocation8 [shape = 's32[1]{0}', space=sflag, size = 0x4, scoped, tag = 'scoped memory for tpu_custom_call.1']
    #allocation9 [shape = 'u8[1024]{0}', space=vmem, size = 0x400, scoped, tag = 'output window, operand 0, single buffered']
    %7 = vsyncpa [#allocation5], 0
    %8 = vsyncpa [#allocation8], 0
    %9 = vsyncpa [#allocation6], 0
    // Predicated region
    $region2: #{tpu_custom_call.1} parent=1 // pred_check
      _
    $region3: #{tpu_custom_call.1} parent=1 // pred_check_branch
      %11 = sbr.rel (0) target = $region5
    $region4: #{tpu_custom_call.1} parent=1 // pred_region
      %s13 = ssub.s32 256, 256
      %14 = vsyncadd [#allocation5], %s13
      %s15 = sshll.u32 [#allocation4], 4
      %s16 = int_to_ptr.vmem [resolvable:$true] %s15
      %21 = dma.hbm_to_vmem [thread:$0]  %s0, 256, %s16, [#allocation5], 128, 128, 8
    $region5: #{tpu_custom_call.1} parent=1 // pred_fallthru
      _
    // Predicated region
    $region6: #{tpu_custom_call.1} parent=1 // pred_check
      _
    $region7: #{tpu_custom_call.1} parent=1 // pred_check_branch
      %23 = sbr.rel (0) target = $region9
    $region8: #{tpu_custom_call.1} parent=1 // pred_region
      %s25 = ssub.s32 256, 256
      %26 = vsyncadd [#allocation8], %s25
      %s27 = sshll.u32 [#allocation7], 4
      %s28 = int_to_ptr.vmem [resolvable:$true] %s27
      %33 = dma.hbm_to_vmem [thread:$0]  %s1, 256, %s28, [#allocation8], 128, 128, 8
    $region9: #{tpu_custom_call.1} parent=1 // pred_fallthru
      _
    // Predicated region
    $region10: #{tpu_custom_call.1} parent=1 // pred_check
      _
    $region11: #{tpu_custom_call.1} parent=1 // pred_check_branch
      %35 = sbr.rel (0) target = $region13
    $region12: #{tpu_custom_call.1} parent=1 // pred_region
      %36 = dma.done [#allocation5], 256
    $region13: #{tpu_custom_call.1} parent=1 // pred_fallthru
      _
    // Predicated region
    $region14: #{tpu_custom_call.1} parent=1 // pred_check
      _
    $region15: #{tpu_custom_call.1} parent=1 // pred_check_branch
      %38 = sbr.rel (0) target = $region17
    $region16: #{tpu_custom_call.1} parent=1 // pred_region
      %39 = dma.done [#allocation8], 256
    $region17: #{tpu_custom_call.1} parent=1 // pred_fallthru
      _
    %p40 = scmp.eq.s32.totalorder 0, 0
    // Predicated region
    $region18: #{tpu_custom_call.1} parent=1 // pred_check
      %p41 = pneg %p40
    $region19: #{tpu_custom_call.1} parent=1 // pred_check_branch
      %43 = sbr.rel (%p41) target = $region21
    $region20: #{tpu_custom_call.1} parent=1 // pred_region
      %44 = vst [vmem:[#allocation2] sm:$0x3] 0.0
      %45 = vst [vmem:[#allocation3] sm:$0x3] 0.0
    $region21: #{tpu_custom_call.1} parent=1 // pred_fallthru
      _
    %v46 = vld [vmem:[#allocation4] sm:$0xff]
    %v47 = vld [vmem:[#allocation4 + $0x8] sm:$0xff]
    %v48 = vld [vmem:[#allocation7] sm:$0xff]
    %v49 = vld [vmem:[#allocation7 + $0x8] sm:$0xff]
    %v50 = vld [vmem:[#allocation2] sm:$0x3]
    %v51 = vmul.f32 %v46, %v48
    %v52 = vmul.f32 %v47, %v49
    %v53 = vrot.slane %v51, 4
    %v54 = vadd.f32 %v51, %v53
    %v55 = vrot.slane %v54, 2
    %v56 = vadd.f32 %v54, %v55
    %v57 = vrot.slane %v56, 1
    %v58 = vadd.f32 %v56, %v57
    %v59 = vrot.slane %v52, 4
    %v60 = vadd.f32 %v52, %v59
    %v61 = vrot.slane %v60, 2
    %v62 = vadd.f32 %v60, %v61
    %v63 = vrot.slane %v62, 1
    %v64 = vadd.f32 %v62, %v63
    %vm67 = vcmask 1041409
    %v68 = vsel %vm67, %v64, %v58
    %v70 = vadd.f32 %v50, %v68
    %71 = vst [vmem:[#allocation2] sm:$0x3] %v70
    %v72 = vld [vmem:[#allocation3] sm:$0x3]
    %v73 = vmul.f32 %v46, %v46
    %v74 = vmul.f32 %v47, %v47
    %v75 = vmul.f32 %v48, %v48
    %v76 = vmul.f32 %v49, %v49
    %v77 = vadd.f32 %v73, %v75
    %v78 = vadd.f32 %v74, %v76
    %v79 = vrot.slane %v77, 4
    %v80 = vadd.f32 %v77, %v79
    %v81 = vrot.slane %v80, 2
    %v82 = vadd.f32 %v80, %v81
    %v83 = vrot.slane %v82, 1
    %v84 = vadd.f32 %v82, %v83
    %v85 = vrot.slane %v78, 4
    %v86 = vadd.f32 %v78, %v85
    %v87 = vrot.slane %v86, 2
    %v88 = vadd.f32 %v86, %v87
    %v89 = vrot.slane %v88, 1
    %v90 = vadd.f32 %v88, %v89
    %v93 = vsel %vm67, %v90, %v84
    %v95 = vadd.f32 %v72, %v93
    %96 = vst [vmem:[#allocation3] sm:$0x3] %v95
    // Predicated region
    $region22: #{tpu_custom_call.1} parent=1 // pred_check
      %p97 = pneg %p40
    $region23: #{tpu_custom_call.1} parent=1 // pred_check_branch
      %99 = sbr.rel (%p97) target = $region25
    $region24: #{tpu_custom_call.1} parent=1 // pred_region
      %v100 = vld [vmem:[#allocation2] sm:$0x3]
      %vm101 = vcmask 1041408
      %v102 = vsel %vm101, %v100, 0.0
      %103 = vadd.xlane.f32.xlu0 %v102
      %v104 = vpop.xlane.xlu0 %103
      %v105 = vld [vmem:[#allocation3] sm:$0x3]
      %v106 = vsel %vm101, %v105, 0.0
      %107 = vadd.xlane.f32.xlu0 %v106
      %v108 = vpop.xlane.xlu0 %107
      %v109 = vadd.f32 %v104, 1.0
      %v110 = vadd.f32 %v108, 1.0
      %v111 = vrcp.pop %v110
      %v112 = vmul.f32 %v109, %v111
      %v113 = vsub.f32 1.0, %v112
      %v115 = vlaneseq
      %v116 = vshrl.u32 %v115, 7
      %v117 = vsub.s32 0, %v116
      %v118 = vrot.slane %v113, %v117
      %v119 = vlaneseq
      %v120 = vshrl.u32 %v119, 7
      %v121 = vsub.s32 1, %v120
      %v122 = vrot.slane %v113, %v121
      %125 = vst [vmem:[#allocation9] sm:$0x1] %v118
      %126 = vst [vmem:[#allocation9 + $0x1] sm:$0x1] %v122
    $region25: #{tpu_custom_call.1} parent=1 // pred_fallthru
      _
    // Predicated region
    $region26: #{tpu_custom_call.1} parent=1 // pred_check
      _
    $region27: #{tpu_custom_call.1} parent=1 // pred_check_branch
      %128 = sbr.rel (0) target = $region29
    $region28: #{tpu_custom_call.1} parent=1 // pred_region
      %s130 = ssub.s32 32, 32
      %131 = vsyncadd [#allocation6], %s130
      %s132 = sshll.u32 [#allocation9], 4
      %s133 = int_to_ptr.vmem [resolvable:$true] %s132
      %138 = dma.vmem_to_hbm [thread:$0]  %s133, 32, %s2, [#allocation6], 16, 16, 1
    $region29: #{tpu_custom_call.1} parent=1 // pred_fallthru
      _
    // Predicated region
    $region30: #{tpu_custom_call.1} parent=1 // pred_check
      _
    $region31: #{tpu_custom_call.1} parent=1 // pred_check_branch
      %140 = sbr.rel (0) target = $region33
    $region32: #{tpu_custom_call.1} parent=1 // pred_region
      %141 = dma.done [#allocation6], 32
    $region33: #{tpu_custom_call.1} parent=1 // pred_fallthru
      _
    %142 = vsyncpa [#allocation5], 1
    %143 = vsyncpa [#allocation8], 1
    %144 = vsyncpa [#allocation6], 1

</llo_original>
